<compile_context>
chip_gen: v7x
topology: tpu7x:2x2x1
jax: 0.10.0
libtpu: 0.0.40
codegen_flags: <defaults>
</compile_context>

<pallas_src>
import jax
import jax.numpy as jnp
from jax.experimental import pallas as pl
from jax.experimental.pallas import tpu as pltpu


def _round_up(x, m):
    return ((x + m - 1) // m) * m


def _choose_row_tile(BM, D, R, itemsize):
    """Rows per grid step, sized from a conservative VMEM budget."""
    # Sublane granularity: 8 rows for f32, 16 for bf16, 32 for int8 — keeps every
    # non-final tile's loads/stores unmasked and dense.
    sub = max(8, 32 // itemsize)
    if BM <= sub:
        return BM  # single full-extent block

    # VMEM footprint per row including lane padding to 128 (u + sigma, in + out).
    def lane_bytes(width):
        return _round_up(width, 128) * itemsize

    per_row = 2 * (lane_bytes(D) + lane_bytes(R * D))
    budget = 8 * 1024 * 1024          # total, incl. double buffering; safe on v5e
    rows = max(budget // (2 * per_row), sub)
    rows = min(rows, BM)
    # Prefer >= 8 grid steps on large problems (steady-state pipelining; several
    # steps per TensorCore on v7x), but keep tiles >= 512 rows to amortize the
    # ~0.35 us per-step overhead.
    rows = min(rows, max(pl.cdiv(BM, 8), 512))
    rows = max((rows // sub) * sub, sub)
    return min(rows, BM)


def _make_extention_kernel(R, D):
    def kernel(u_ref, s_ref, uo_ref, so_ref):
        # u_ref/s_ref:   (row_tile, D)       lane-dense input blocks
        # uo_ref/so_ref: (row_tile, R * D)   lane-dense output blocks
        # Replicate each input row R times along the lane axis via static
        # lane-window stores (ref views are free; no relayout, no concat).
        for r in range(R):
            uo_ref[:, r * D:(r + 1) * D] = u_ref[...]
            so_ref[:, r * D:(r + 1) * D] = s_ref[...]
    return kernel


def extention_forward(u, sigma, H, *, row_tile=None):
    """u, sigma: (B, M, D); H static int with H % M == 0.

    Returns (u_repeated, sigma_repeated), each (B, H, D), matching
    torch.repeat_interleave(x, H // M, dim=1).
    """
    B, M, D = u.shape
    assert sigma.shape == u.shape
    assert H % M == 0, "H must be a multiple of out_dim"
    R = H // M
    BM = B * M
    itemsize = jnp.dtype(u.dtype).itemsize

    # Free reshapes: fold (B, M) -> BM rows, keep D as the lane axis.
    u2 = u.reshape(BM, D)
    s2 = sigma.reshape(BM, D)

    if row_tile is None:
        row_tile = _choose_row_tile(BM, D, R, itemsize)
    grid = (pl.cdiv(BM, row_tile),)

    uo, so = pl.pallas_call(
        _make_extention_kernel(R, D),
        out_shape=(
            jax.ShapeDtypeStruct((BM, R * D), u.dtype),
            jax.ShapeDtypeStruct((BM, R * D), sigma.dtype),
        ),
        grid=grid,
        in_specs=[
            pl.BlockSpec((row_tile, D), lambda i: (i, 0)),
            pl.BlockSpec((row_tile, D), lambda i: (i, 0)),
        ],
        out_specs=(
            pl.BlockSpec((row_tile, R * D), lambda i: (i, 0)),
            pl.BlockSpec((row_tile, R * D), lambda i: (i, 0)),
        ),
        compiler_params=pltpu.CompilerParams(
            dimension_semantics=("parallel",),
            vmem_limit_bytes=32 * 1024 * 1024,
        ),
    )(u2, s2)

    # (BM, R*D) row-major is bit-identical to (B, M, R, D) == (B, H, D): free reshape.
    return uo.reshape(B, H, D), so.reshape(B, H, D)


if __name__ == "__main__":
    # Shapes implied by the module's own test_module: ResolutionAdaptiveSlicing
    # produces u/sigma of shape (b=32, out_dim=48, d=8) and Extention is called
    # with H=96 (repeat = 2).  B*M = 1536 -> 3 grid steps of 512 rows here.
    B, M, D = 32, 48, 8
    H = 96

    key = jax.random.PRNGKey(0)
    ku, ks = jax.random.split(key)
    u = jax.random.normal(ku, (B, M, D), dtype=jnp.float32)
    sigma = jax.random.normal(ks, (B, M, D), dtype=jnp.float32)

    u_rep, s_rep = extention_forward(u, sigma, H)
    u_rep, s_rep = jax.block_until_ready((u_rep, s_rep))

    # Reference: repeat_interleave along dim=1.
    R = H // M
    u_expect = jnp.repeat(u, R, axis=1)
    s_expect = jnp.repeat(sigma, R, axis=1)

    assert u_rep.shape == (B, H, D) and s_rep.shape == (B, H, D)
    assert jnp.array_equal(u_rep, u_expect)
    assert jnp.array_equal(s_rep, s_expect)

    print("KERNEL_OK")
</pallas_src>

<mosaic_0001>
module attributes {stable_mosaic.version = 11 : i64} {
  func.func @kernel(%arg0: i32, %arg1: memref<512x8xf32, #tpu.memory_space<vmem>>, %arg2: memref<512x8xf32, #tpu.memory_space<vmem>>, %arg3: memref<512x16xf32, #tpu.memory_space<vmem>>, %arg4: memref<512x16xf32, #tpu.memory_space<vmem>>) attributes {dimension_semantics = [#tpu.dimension_semantics<parallel>], iteration_bounds = array<i64: 3>, scalar_prefetch = 0 : i64, scratch_operands = 0 : i64, tpu.core_type = #tpu.core_type<tc>, window_params = [{transform_indices = @transform_0, window_bounds = array<i64: 512, 8>}, {transform_indices = @transform_1, window_bounds = array<i64: 512, 8>}, {transform_indices = @transform_2, window_bounds = array<i64: 512, 16>}, {transform_indices = @transform_3, window_bounds = array<i64: 512, 16>}]} {
    %c0 = arith.constant 0 : index
    %c0_0 = arith.constant 0 : index
    %0 = vector.load %arg1[%c0, %c0_0] : memref<512x8xf32, #tpu.memory_space<vmem>>, vector<512x8xf32>
    %c0_1 = arith.constant 0 : index
    %c0_2 = arith.constant 0 : index
    %1 = vector.load %arg3[%c0_1, %c0_2] : memref<512x16xf32, #tpu.memory_space<vmem>>, vector<512x8xf32>
    tpu.vector_store %arg3[%c0_1, %c0_2], %0 {strides = array<i32>} : memref<512x16xf32, #tpu.memory_space<vmem>>, vector<512x8xf32>,
    %c0_3 = arith.constant 0 : index
    %c0_4 = arith.constant 0 : index
    %2 = vector.load %arg2[%c0_3, %c0_4] : memref<512x8xf32, #tpu.memory_space<vmem>>, vector<512x8xf32>
    %c0_5 = arith.constant 0 : index
    %c0_6 = arith.constant 0 : index
    %3 = vector.load %arg4[%c0_5, %c0_6] : memref<512x16xf32, #tpu.memory_space<vmem>>, vector<512x8xf32>
    tpu.vector_store %arg4[%c0_5, %c0_6], %2 {strides = array<i32>} : memref<512x16xf32, #tpu.memory_space<vmem>>, vector<512x8xf32>,
    %c0_7 = arith.constant 0 : index
    %c0_8 = arith.constant 0 : index
    %4 = vector.load %arg1[%c0_7, %c0_8] : memref<512x8xf32, #tpu.memory_space<vmem>>, vector<512x8xf32>
    %c0_9 = arith.constant 0 : index
    %c8 = arith.constant 8 : index
    %5 = vector.load %arg3[%c0_9, %c8] : memref<512x16xf32, #tpu.memory_space<vmem>>, vector<512x8xf32>
    tpu.vector_store %arg3[%c0_9, %c8], %4 {strides = array<i32>} : memref<512x16xf32, #tpu.memory_space<vmem>>, vector<512x8xf32>,
    %c0_10 = arith.constant 0 : index
    %c0_11 = arith.constant 0 : index
    %6 = vector.load %arg2[%c0_10, %c0_11] : memref<512x8xf32, #tpu.memory_space<vmem>>, vector<512x8xf32>
    %c0_12 = arith.constant 0 : index
    %c8_13 = arith.constant 8 : index
    %7 = vector.load %arg4[%c0_12, %c8_13] : memref<512x16xf32, #tpu.memory_space<vmem>>, vector<512x8xf32>
    tpu.vector_store %arg4[%c0_12, %c8_13], %6 {strides = array<i32>} : memref<512x16xf32, #tpu.memory_space<vmem>>, vector<512x8xf32>,
    return
  }
  func.func @transform_0(%arg0: i32) -> (i32, i32) {
    %c0_i32 = arith.constant 0 : i32
    %c0_i32_0 = arith.constant 0 : i32
    return %arg0, %c0_i32 : i32, i32
  }
  func.func @transform_1(%arg0: i32) -> (i32, i32) {
    %c0_i32 = arith.constant 0 : i32
    %c0_i32_0 = arith.constant 0 : i32
    return %arg0, %c0_i32 : i32, i32
  }
  func.func @transform_2(%arg0: i32) -> (i32, i32) {
    %c0_i32 = arith.constant 0 : i32
    %c0_i32_0 = arith.constant 0 : i32
    return %arg0, %c0_i32 : i32, i32
  }
  func.func @transform_3(%arg0: i32) -> (i32, i32) {
    %c0_i32 = arith.constant 0 : i32
    %c0_i32_0 = arith.constant 0 : i32
    return %arg0, %c0_i32 : i32, i32
  }
}

</mosaic_0001>

<llo_original>
// kernel: tpu_custom_call.1
$region0: #{tpu_custom_call.1}
  #allocation0 [shape = 'u32[]', space=smem, size = 0x4, offset = 0x4, fixed_abs, tag = 'smem constant byte address 0x4 - core index']
  #allocation1 [shape = 'u32[144,128]{1,0:T(1,128)}', space=vmem, size = 0x12000, scoped, tag = 'internal scratch']
  %s0 = inlined_call_operand.vmem [shape: f32[1536,8], index: 0, kind: input, shape index: {}]
  %s1 = inlined_call_operand.vmem [shape: f32[1536,8], index: 1, kind: input, shape index: {}]
  %s2 = inlined_call_operand.vmem [shape: f32[1536,16], index: 2, kind: output, shape index: {0}]
  %s3 = inlined_call_operand.vmem [shape: f32[1536,16], index: 3, kind: output, shape index: {1}]
  %4 = xla_tuple %s2, %s3
  %s5 = sld [smem:[#allocation0]]
  $region49: #{tpu_custom_call.1} parent=0
    _
  %s7 = ssub.s32 1, %s5
  %s8 = scalar_select 0, %s7, %s5
  loop: start=0, step=1, limit=5
  $region2: #{tpu_custom_call.1} parent=0 // loop_pre_header
    _
  $region3: #{tpu_custom_call.1} parent=0 // loop_header
    %s10 = sphi 0, %s14
    %p11 = scmp.ge.s32.totalorder %s10, 5
    %s20 = sphi 0, %s22
    %s23 = sphi 0, %s20
    %s24 = sphi 0, %s23
    %s40 = sphi 0, %s24
    %s46 = sphi 0, %s48
    %s49 = sphi 0, %s46
    %s50 = sphi 0, %s49
    %s66 = sphi 0, %s50
    %s72 = sphi 0, %s74
    %s75 = sphi 0, %s72
    %s76 = sphi 0, %s75
    %s92 = sphi 0, %s76
    %s98 = sphi 0, %s100
    %s101 = sphi 0, %s98
    %s102 = sphi 0, %s101
    %s118 = sphi 0, %s102
  $region4: #{tpu_custom_call.1} parent=0 // loop_header_branch
    %13 = sbr.rel (%p11) target = $region8
  $region5: #{tpu_custom_call.1} parent=0 // loop_body
    %s15 = ssub.s32 %s10, 1
    %s16 = ssub.s32 %s10, 2
    %s17 = sadd.s32 %s10, 1
    %s18 = ssub.s32 %s10, %s17
    %p19 = scmp.eq.s32.totalorder %s18, 0
    %s21 = sadd.s32 %s20, 1
    %s22 = scalar_select %p19, %s20, %s21
    %p25 = pneg %p19
    %p26 = scmp.eq.s32.totalorder %s10, 2
    %p27 = por %p25, %p26
    %p28 = scmp.ne.s32.totalorder %s20, %s23
    %p29 = scmp.eq.s32.totalorder %s10, 0
    %p30 = por %p28, %p29
    %p31 = scmp.ne.s32.totalorder %s20, %s23
    %p32 = scmp.eq.s32.totalorder %s15, 2
    %p33 = por %p31, %p32
    %p34 = scmp.ne.s32.totalorder %s23, %s24
    %p35 = scmp.eq.s32.totalorder %s15, 0
    %p36 = por %p34, %p35
    %p37 = scmp.ne.s32.totalorder %s23, %s24
    %p38 = scmp.eq.s32.totalorder %s16, 2
    %p39 = por %p37, %p38
    %p41 = scmp.ne.s32.totalorder %s24, %s40
    %p42 = scmp.eq.s32.totalorder %s16, 0
    %p43 = por %p41, %p42
    %s44 = ssub.s32 %s10, %s17
    %p45 = scmp.eq.s32.totalorder %s44, 0
    %s47 = sadd.s32 %s46, 1
    %s48 = scalar_select %p45, %s46, %s47
    %p51 = pneg %p45
    %p52 = scmp.eq.s32.totalorder %s10, 2
    %p53 = por %p51, %p52
    %p54 = scmp.ne.s32.totalorder %s46, %s49
    %p55 = scmp.eq.s32.totalorder %s10, 0
    %p56 = por %p54, %p55
    %p57 = scmp.ne.s32.totalorder %s46, %s49
    %p58 = scmp.eq.s32.totalorder %s15, 2
    %p59 = por %p57, %p58
    %p60 = scmp.ne.s32.totalorder %s49, %s50
    %p61 = scmp.eq.s32.totalorder %s15, 0
    %p62 = por %p60, %p61
    %p63 = scmp.ne.s32.totalorder %s49, %s50
    %p64 = scmp.eq.s32.totalorder %s16, 2
    %p65 = por %p63, %p64
    %p67 = scmp.ne.s32.totalorder %s50, %s66
    %p68 = scmp.eq.s32.totalorder %s16, 0
    %p69 = por %p67, %p68
    %s70 = ssub.s32 %s10, %s17
    %p71 = scmp.eq.s32.totalorder %s70, 0
    %s73 = sadd.s32 %s72, 1
    %s74 = scalar_select %p71, %s72, %s73
    %p77 = pneg %p71
    %p78 = scmp.eq.s32.totalorder %s10, 2
    %p79 = por %p77, %p78
    %p80 = scmp.ne.s32.totalorder %s72, %s75
    %p81 = scmp.eq.s32.totalorder %s10, 0
    %p82 = por %p80, %p81
    %p83 = scmp.ne.s32.totalorder %s72, %s75
    %p84 = scmp.eq.s32.totalorder %s15, 2
    %p85 = por %p83, %p84
    %p86 = scmp.ne.s32.totalorder %s75, %s76
    %p87 = scmp.eq.s32.totalorder %s15, 0
    %p88 = por %p86, %p87
    %p89 = scmp.ne.s32.totalorder %s75, %s76
    %p90 = scmp.eq.s32.totalorder %s16, 2
    %p91 = por %p89, %p90
    %p93 = scmp.ne.s32.totalorder %s76, %s92
    %p94 = scmp.eq.s32.totalorder %s16, 0
    %p95 = por %p93, %p94
    %s96 = ssub.s32 %s10, %s17
    %p97 = scmp.eq.s32.totalorder %s96, 0
    %s99 = sadd.s32 %s98, 1
    %s100 = scalar_select %p97, %s98, %s99
    %p103 = pneg %p97
    %p104 = scmp.eq.s32.totalorder %s10, 2
    %p105 = por %p103, %p104
    %p106 = scmp.ne.s32.totalorder %s98, %s101
    %p107 = scmp.eq.s32.totalorder %s10, 0
    %p108 = por %p106, %p107
    %p109 = scmp.ne.s32.totalorder %s98, %s101
    %p110 = scmp.eq.s32.totalorder %s15, 2
    %p111 = por %p109, %p110
    %p112 = scmp.ne.s32.totalorder %s101, %s102
    %p113 = scmp.eq.s32.totalorder %s15, 0
    %p114 = por %p112, %p113
    %p115 = scmp.ne.s32.totalorder %s101, %s102
    %p116 = scmp.eq.s32.totalorder %s16, 2
    %p117 = por %p115, %p116
    %p119 = scmp.ne.s32.totalorder %s102, %s118
    %p120 = scmp.eq.s32.totalorder %s16, 0
    %p121 = por %p119, %p120
    %p122 = scmp.le.s32.totalorder 1, %s10
    %p123 = scmp.lt.s32.totalorder %s10, 4
    %p124 = pnand %p122, %p123
    %p125 = pneg %p124
    // Predicated region
    $region9: #{tpu_custom_call.1} parent=5 // pred_check
      _
    $region10: #{tpu_custom_call.1} parent=5 // pred_check_branch
      %127 = sbr.rel (%p124) target = $region12
    $region11: #{tpu_custom_call.1} parent=5 // pred_region
      %s128 = ssub.s32 %s10, 1
    $region12: #{tpu_custom_call.1} parent=5 // pred_fallthru
      _
    %p129 = scmp.lt.s32.totalorder %s10, 3
    // Predicated region
    $region13: #{tpu_custom_call.1} parent=5 // pred_check
      %p130 = pneg %p129
    $region14: #{tpu_custom_call.1} parent=5 // pred_check_branch
      %132 = sbr.rel (%p130) target = $region16
    $region15: #{tpu_custom_call.1} parent=5 // pred_region
      // Predicated region
      $region17: #{tpu_custom_call.1} parent=15 // pred_check
        %p133 = pneg %p30
      $region18: #{tpu_custom_call.1} parent=15 // pred_check_branch
        %135 = sbr.rel (%p133) target = $region20
      $region19: #{tpu_custom_call.1} parent=15 // pred_region
        %s136 = smul.u32 64, %s10
        %p137 = scmp.lt.s32.totalorder %s136, 191
        %s138 = scalar_select %p137, %s136, 191
        %s139 = smul.addr %s138, 8
        %s140 = scalar_lea.vmem %s0, %s139
        %s141 = smul.u32 64, %s10
      $region20: #{tpu_custom_call.1} parent=15 // pred_fallthru
        _
      // Predicated region
      $region21: #{tpu_custom_call.1} parent=15 // pred_check
        %p142 = pneg %p56
      $region22: #{tpu_custom_call.1} parent=15 // pred_check_branch
        %144 = sbr.rel (%p142) target = $region24
      $region23: #{tpu_custom_call.1} parent=15 // pred_region
        %s145 = smul.u32 64, %s10
        %p146 = scmp.lt.s32.totalorder %s145, 191
        %s147 = scalar_select %p146, %s145, 191
        %s148 = smul.addr %s147, 8
        %s149 = scalar_lea.vmem %s1, %s148
        %s150 = smul.u32 64, %s10
      $region24: #{tpu_custom_call.1} parent=15 // pred_fallthru
        _
    $region16: #{tpu_custom_call.1} parent=5 // pred_fallthru
      _
    %p151 = scmp.le.s32.totalorder 1, %s10
    %p152 = scmp.lt.s32.totalorder %s10, 4
    %p153 = pnand %p151, %p152
    %p154 = pneg %p153
    // Predicated region
    $region25: #{tpu_custom_call.1} parent=5 // pred_check
      _
    $region26: #{tpu_custom_call.1} parent=5 // pred_check_branch
      %156 = sbr.rel (%p153) target = $region28
    $region27: #{tpu_custom_call.1} parent=5 // pred_region
      %s157 = ssub.s32 %s10, 1
      %s158 = smul.u32 64, %s15
      %p159 = scmp.lt.s32.totalorder %s158, 191
      %s160 = scalar_select %p159, %s158, 191
      %s161 = smul.addr %s160, 8
      %s162 = scalar_lea.vmem %s0, %s161
      %p163 = pneg %p36
      %p164 = pneg %p33
      %s165 = smul.u32 64, %s15
      %p166 = scmp.lt.s32.totalorder %s165, 191
      %s167 = scalar_select %p166, %s165, 191
      %s168 = smul.addr %s167, 8
      %s169 = scalar_lea.vmem %s1, %s168
      %p170 = pneg %p62
      %p171 = pneg %p59
      %p172 = pneg %p88
      %p173 = pneg %p85
      %s174 = smul.u32 64, %s15
      %p175 = scmp.lt.s32.totalorder %s174, 191
      %s176 = scalar_select %p175, %s174, 191
      %s177 = smul.addr %s176, 8
      %s178 = scalar_lea.vmem %s2, %s177
      %p179 = pneg %p114
      %p180 = pneg %p111
      %s181 = smul.u32 64, %s15
      %p182 = scmp.lt.s32.totalorder %s181, 191
      %s183 = scalar_select %p182, %s181, 191
      %s184 = smul.addr %s183, 8
      %s185 = scalar_lea.vmem %s3, %s184
      %s186 = smul.u32 64, %s15
      %p187 = scmp.lt.s32.totalorder %s186, 191
      %s188 = scalar_select %p187, %s186, 191
      %s189 = smul.addr %s188, 8
      %s190 = scalar_lea.vmem %s0, %s189
      %s191 = smul.u32 64, %s15
      %s192 = smul.u32 64, %s15
      %p193 = scmp.lt.s32.totalorder %s192, 191
      %s194 = scalar_select %p193, %s192, 191
      %s195 = smul.addr %s194, 8
      %s196 = scalar_lea.vmem %s1, %s195
      %s197 = smul.u32 64, %s15
      %s198 = smul.u32 64, %s15
      %p199 = scmp.lt.s32.totalorder %s198, 191
      %s200 = scalar_select %p199, %s198, 191
      %s201 = smul.addr %s200, 8
      %s202 = scalar_lea.vmem %s2, %s201
      %s203 = smul.u32 64, %s15
      %s204 = smul.u32 64, %s15
      %p205 = scmp.lt.s32.totalorder %s204, 191
      %s206 = scalar_select %p205, %s204, 191
      %s207 = smul.addr %s206, 8
      %s208 = scalar_lea.vmem %s3, %s207
      %s209 = smul.u32 64, %s15
      %v210 = vld [vmem:[%s190] sm:$0xff]
      %v211 = vld [vmem:[%s190 + $0x8] sm:$0xff]
      %v212 = vld [vmem:[%s190 + $0x10] sm:$0xff]
      %v213 = vld [vmem:[%s190 + $0x18] sm:$0xff]
      %v214 = vld [vmem:[%s190 + $0x20] sm:$0xff]
      %v215 = vld [vmem:[%s190 + $0x28] sm:$0xff]
      %v216 = vld [vmem:[%s190 + $0x30] sm:$0xff]
      %v217 = vld [vmem:[%s190 + $0x38] sm:$0xff]
      %v218 = vld [vmem:[%s190 + $0x40] sm:$0xff]
      %v219 = vld [vmem:[%s190 + $0x48] sm:$0xff]
      %v220 = vld [vmem:[%s190 + $0x50] sm:$0xff]
      %v221 = vld [vmem:[%s190 + $0x58] sm:$0xff]
      %v222 = vld [vmem:[%s190 + $0x60] sm:$0xff]
      %v223 = vld [vmem:[%s190 + $0x68] sm:$0xff]
      %v224 = vld [vmem:[%s190 + $0x70] sm:$0xff]
      %v225 = vld [vmem:[%s190 + $0x78] sm:$0xff]
      %v226 = vld [vmem:[%s190 + $0x80] sm:$0xff]
      %v227 = vld [vmem:[%s190 + $0x88] sm:$0xff]
      %v228 = vld [vmem:[%s190 + $0x90] sm:$0xff]
      %v229 = vld [vmem:[%s190 + $0x98] sm:$0xff]
      %v230 = vld [vmem:[%s190 + $0xa0] sm:$0xff]
      %v231 = vld [vmem:[%s190 + $0xa8] sm:$0xff]
      %v232 = vld [vmem:[%s190 + $0xb0] sm:$0xff]
      %v233 = vld [vmem:[%s190 + $0xb8] sm:$0xff]
      %v234 = vld [vmem:[%s190 + $0xc0] sm:$0xff]
      %v235 = vld [vmem:[%s190 + $0xc8] sm:$0xff]
      %v236 = vld [vmem:[%s190 + $0xd0] sm:$0xff]
      %v237 = vld [vmem:[%s190 + $0xd8] sm:$0xff]
      %v238 = vld [vmem:[%s190 + $0xe0] sm:$0xff]
      %v239 = vld [vmem:[%s190 + $0xe8] sm:$0xff]
      %v240 = vld [vmem:[%s190 + $0xf0] sm:$0xff]
      %v241 = vld [vmem:[%s190 + $0xf8] sm:$0xff]
      %v242 = vld [vmem:[%s190 + $0x100] sm:$0xff]
      %v243 = vld [vmem:[%s190 + $0x108] sm:$0xff]
      %v244 = vld [vmem:[%s190 + $0x110] sm:$0xff]
      %v245 = vld [vmem:[%s190 + $0x118] sm:$0xff]
      %v246 = vld [vmem:[%s190 + $0x120] sm:$0xff]
      %v247 = vld [vmem:[%s190 + $0x128] sm:$0xff]
      %v248 = vld [vmem:[%s190 + $0x130] sm:$0xff]
      %v249 = vld [vmem:[%s190 + $0x138] sm:$0xff]
      %v250 = vld [vmem:[%s190 + $0x140] sm:$0xff]
      %v251 = vld [vmem:[%s190 + $0x148] sm:$0xff]
      %v252 = vld [vmem:[%s190 + $0x150] sm:$0xff]
      %v253 = vld [vmem:[%s190 + $0x158] sm:$0xff]
      %v254 = vld [vmem:[%s190 + $0x160] sm:$0xff]
      %v255 = vld [vmem:[%s190 + $0x168] sm:$0xff]
      %v256 = vld [vmem:[%s190 + $0x170] sm:$0xff]
      %v257 = vld [vmem:[%s190 + $0x178] sm:$0xff]
      %v258 = vld [vmem:[%s190 + $0x180] sm:$0xff]
      %v259 = vld [vmem:[%s190 + $0x188] sm:$0xff]
      %v260 = vld [vmem:[%s190 + $0x190] sm:$0xff]
      %v261 = vld [vmem:[%s190 + $0x198] sm:$0xff]
      %v262 = vld [vmem:[%s190 + $0x1a0] sm:$0xff]
      %v263 = vld [vmem:[%s190 + $0x1a8] sm:$0xff]
      %v264 = vld [vmem:[%s190 + $0x1b0] sm:$0xff]
      %v265 = vld [vmem:[%s190 + $0x1b8] sm:$0xff]
      %v266 = vld [vmem:[%s190 + $0x1c0] sm:$0xff]
      %v267 = vld [vmem:[%s190 + $0x1c8] sm:$0xff]
      %v268 = vld [vmem:[%s190 + $0x1d0] sm:$0xff]
      %v269 = vld [vmem:[%s190 + $0x1d8] sm:$0xff]
      %v270 = vld [vmem:[%s190 + $0x1e0] sm:$0xff]
      %v271 = vld [vmem:[%s190 + $0x1e8] sm:$0xff]
      %v272 = vld [vmem:[%s190 + $0x1f0] sm:$0xff]
      %v273 = vld [vmem:[%s190 + $0x1f8] sm:$0xff]
      %vm274 = vcmask 64512
      %275 = vst.msk [vmem:[%s202] sm:$0xff] %vm274, %v210
      %276 = vst.msk [vmem:[%s202 + $0x8] sm:$0xff] %vm274, %v211
      %277 = vst.msk [vmem:[%s202 + $0x10] sm:$0xff] %vm274, %v212
      %278 = vst.msk [vmem:[%s202 + $0x18] sm:$0xff] %vm274, %v213
      %279 = vst.msk [vmem:[%s202 + $0x20] sm:$0xff] %vm274, %v214
      %280 = vst.msk [vmem:[%s202 + $0x28] sm:$0xff] %vm274, %v215
      %281 = vst.msk [vmem:[%s202 + $0x30] sm:$0xff] %vm274, %v216
      %282 = vst.msk [vmem:[%s202 + $0x38] sm:$0xff] %vm274, %v217
      %283 = vst.msk [vmem:[%s202 + $0x40] sm:$0xff] %vm274, %v218
      %284 = vst.msk [vmem:[%s202 + $0x48] sm:$0xff] %vm274, %v219
      %285 = vst.msk [vmem:[%s202 + $0x50] sm:$0xff] %vm274, %v220
      %286 = vst.msk [vmem:[%s202 + $0x58] sm:$0xff] %vm274, %v221
      %287 = vst.msk [vmem:[%s202 + $0x60] sm:$0xff] %vm274, %v222
      %288 = vst.msk [vmem:[%s202 + $0x68] sm:$0xff] %vm274, %v223
      %289 = vst.msk [vmem:[%s202 + $0x70] sm:$0xff] %vm274, %v224
      %290 = vst.msk [vmem:[%s202 + $0x78] sm:$0xff] %vm274, %v225
      %291 = vst.msk [vmem:[%s202 + $0x80] sm:$0xff] %vm274, %v226
      %292 = vst.msk [vmem:[%s202 + $0x88] sm:$0xff] %vm274, %v227
      %293 = vst.msk [vmem:[%s202 + $0x90] sm:$0xff] %vm274, %v228
      %294 = vst.msk [vmem:[%s202 + $0x98] sm:$0xff] %vm274, %v229
      %295 = vst.msk [vmem:[%s202 + $0xa0] sm:$0xff] %vm274, %v230
      %296 = vst.msk [vmem:[%s202 + $0xa8] sm:$0xff] %vm274, %v231
      %297 = vst.msk [vmem:[%s202 + $0xb0] sm:$0xff] %vm274, %v232
      %298 = vst.msk [vmem:[%s202 + $0xb8] sm:$0xff] %vm274, %v233
      %299 = vst.msk [vmem:[%s202 + $0xc0] sm:$0xff] %vm274, %v234
      %300 = vst.msk [vmem:[%s202 + $0xc8] sm:$0xff] %vm274, %v235
      %301 = vst.msk [vmem:[%s202 + $0xd0] sm:$0xff] %vm274, %v236
      %302 = vst.msk [vmem:[%s202 + $0xd8] sm:$0xff] %vm274, %v237
      %303 = vst.msk [vmem:[%s202 + $0xe0] sm:$0xff] %vm274, %v238
      %304 = vst.msk [vmem:[%s202 + $0xe8] sm:$0xff] %vm274, %v239
      %305 = vst.msk [vmem:[%s202 + $0xf0] sm:$0xff] %vm274, %v240
      %306 = vst.msk [vmem:[%s202 + $0xf8] sm:$0xff] %vm274, %v241
      %307 = vst.msk [vmem:[%s202 + $0x100] sm:$0xff] %vm274, %v242
      %308 = vst.msk [vmem:[%s202 + $0x108] sm:$0xff] %vm274, %v243
      %309 = vst.msk [vmem:[%s202 + $0x110] sm:$0xff] %vm274, %v244
      %310 = vst.msk [vmem:[%s202 + $0x118] sm:$0xff] %vm274, %v245
      %311 = vst.msk [vmem:[%s202 + $0x120] sm:$0xff] %vm274, %v246
      %312 = vst.msk [vmem:[%s202 + $0x128] sm:$0xff] %vm274, %v247
      %313 = vst.msk [vmem:[%s202 + $0x130] sm:$0xff] %vm274, %v248
      %314 = vst.msk [vmem:[%s202 + $0x138] sm:$0xff] %vm274, %v249
      %315 = vst.msk [vmem:[%s202 + $0x140] sm:$0xff] %vm274, %v250
      %316 = vst.msk [vmem:[%s202 + $0x148] sm:$0xff] %vm274, %v251
      %317 = vst.msk [vmem:[%s202 + $0x150] sm:$0xff] %vm274, %v252
      %318 = vst.msk [vmem:[%s202 + $0x158] sm:$0xff] %vm274, %v253
      %319 = vst.msk [vmem:[%s202 + $0x160] sm:$0xff] %vm274, %v254
      %320 = vst.msk [vmem:[%s202 + $0x168] sm:$0xff] %vm274, %v255
      %321 = vst.msk [vmem:[%s202 + $0x170] sm:$0xff] %vm274, %v256
      %322 = vst.msk [vmem:[%s202 + $0x178] sm:$0xff] %vm274, %v257
      %323 = vst.msk [vmem:[%s202 + $0x180] sm:$0xff] %vm274, %v258
      %324 = vst.msk [vmem:[%s202 + $0x188] sm:$0xff] %vm274, %v259
      %325 = vst.msk [vmem:[%s202 + $0x190] sm:$0xff] %vm274, %v260
      %326 = vst.msk [vmem:[%s202 + $0x198] sm:$0xff] %vm274, %v261
      %327 = vst.msk [vmem:[%s202 + $0x1a0] sm:$0xff] %vm274, %v262
      %328 = vst.msk [vmem:[%s202 + $0x1a8] sm:$0xff] %vm274, %v263
      %329 = vst.msk [vmem:[%s202 + $0x1b0] sm:$0xff] %vm274, %v264
      %330 = vst.msk [vmem:[%s202 + $0x1b8] sm:$0xff] %vm274, %v265
      %331 = vst.msk [vmem:[%s202 + $0x1c0] sm:$0xff] %vm274, %v266
      %332 = vst.msk [vmem:[%s202 + $0x1c8] sm:$0xff] %vm274, %v267
      %333 = vst.msk [vmem:[%s202 + $0x1d0] sm:$0xff] %vm274, %v268
      %334 = vst.msk [vmem:[%s202 + $0x1d8] sm:$0xff] %vm274, %v269
      %335 = vst.msk [vmem:[%s202 + $0x1e0] sm:$0xff] %vm274, %v270
      %336 = vst.msk [vmem:[%s202 + $0x1e8] sm:$0xff] %vm274, %v271
      %337 = vst.msk [vmem:[%s202 + $0x1f0] sm:$0xff] %vm274, %v272
      %338 = vst.msk [vmem:[%s202 + $0x1f8] sm:$0xff] %vm274, %v273
      %v339 = vld [vmem:[%s196] sm:$0xff]
      %v340 = vld [vmem:[%s196 + $0x8] sm:$0xff]
      %v341 = vld [vmem:[%s196 + $0x10] sm:$0xff]
      %v342 = vld [vmem:[%s196 + $0x18] sm:$0xff]
      %v343 = vld [vmem:[%s196 + $0x20] sm:$0xff]
      %v344 = vld [vmem:[%s196 + $0x28] sm:$0xff]
      %v345 = vld [vmem:[%s196 + $0x30] sm:$0xff]
      %v346 = vld [vmem:[%s196 + $0x38] sm:$0xff]
      %v347 = vld [vmem:[%s196 + $0x40] sm:$0xff]
      %v348 = vld [vmem:[%s196 + $0x48] sm:$0xff]
      %v349 = vld [vmem:[%s196 + $0x50] sm:$0xff]
      %v350 = vld [vmem:[%s196 + $0x58] sm:$0xff]
      %v351 = vld [vmem:[%s196 + $0x60] sm:$0xff]
      %v352 = vld [vmem:[%s196 + $0x68] sm:$0xff]
      %v353 = vld [vmem:[%s196 + $0x70] sm:$0xff]
      %v354 = vld [vmem:[%s196 + $0x78] sm:$0xff]
      %v355 = vld [vmem:[%s196 + $0x80] sm:$0xff]
      %v356 = vld [vmem:[%s196 + $0x88] sm:$0xff]
      %v357 = vld [vmem:[%s196 + $0x90] sm:$0xff]
      %v358 = vld [vmem:[%s196 + $0x98] sm:$0xff]
      %v359 = vld [vmem:[%s196 + $0xa0] sm:$0xff]
      %v360 = vld [vmem:[%s196 + $0xa8] sm:$0xff]
      %v361 = vld [vmem:[%s196 + $0xb0] sm:$0xff]
      %v362 = vld [vmem:[%s196 + $0xb8] sm:$0xff]
      %v363 = vld [vmem:[%s196 + $0xc0] sm:$0xff]
      %v364 = vld [vmem:[%s196 + $0xc8] sm:$0xff]
      %v365 = vld [vmem:[%s196 + $0xd0] sm:$0xff]
      %v366 = vld [vmem:[%s196 + $0xd8] sm:$0xff]
      %v367 = vld [vmem:[%s196 + $0xe0] sm:$0xff]
      %v368 = vld [vmem:[%s196 + $0xe8] sm:$0xff]
      %v369 = vld [vmem:[%s196 + $0xf0] sm:$0xff]
      %v370 = vld [vmem:[%s196 + $0xf8] sm:$0xff]
      %v371 = vld [vmem:[%s196 + $0x100] sm:$0xff]
      %v372 = vld [vmem:[%s196 + $0x108] sm:$0xff]
      %v373 = vld [vmem:[%s196 + $0x110] sm:$0xff]
      %v374 = vld [vmem:[%s196 + $0x118] sm:$0xff]
      %v375 = vld [vmem:[%s196 + $0x120] sm:$0xff]
      %v376 = vld [vmem:[%s196 + $0x128] sm:$0xff]
      %v377 = vld [vmem:[%s196 + $0x130] sm:$0xff]
      %v378 = vld [vmem:[%s196 + $0x138] sm:$0xff]
      %v379 = vld [vmem:[%s196 + $0x140] sm:$0xff]
      %v380 = vld [vmem:[%s196 + $0x148] sm:$0xff]
      %v381 = vld [vmem:[%s196 + $0x150] sm:$0xff]
      %v382 = vld [vmem:[%s196 + $0x158] sm:$0xff]
      %v383 = vld [vmem:[%s196 + $0x160] sm:$0xff]
      %v384 = vld [vmem:[%s196 + $0x168] sm:$0xff]
      %v385 = vld [vmem:[%s196 + $0x170] sm:$0xff]
      %v386 = vld [vmem:[%s196 + $0x178] sm:$0xff]
      %v387 = vld [vmem:[%s196 + $0x180] sm:$0xff]
      %v388 = vld [vmem:[%s196 + $0x188] sm:$0xff]
      %v389 = vld [vmem:[%s196 + $0x190] sm:$0xff]
      %v390 = vld [vmem:[%s196 + $0x198] sm:$0xff]
      %v391 = vld [vmem:[%s196 + $0x1a0] sm:$0xff]
      %v392 = vld [vmem:[%s196 + $0x1a8] sm:$0xff]
      %v393 = vld [vmem:[%s196 + $0x1b0] sm:$0xff]
      %v394 = vld [vmem:[%s196 + $0x1b8] sm:$0xff]
      %v395 = vld [vmem:[%s196 + $0x1c0] sm:$0xff]
      %v396 = vld [vmem:[%s196 + $0x1c8] sm:$0xff]
      %v397 = vld [vmem:[%s196 + $0x1d0] sm:$0xff]
      %v398 = vld [vmem:[%s196 + $0x1d8] sm:$0xff]
      %v399 = vld [vmem:[%s196 + $0x1e0] sm:$0xff]
      %v400 = vld [vmem:[%s196 + $0x1e8] sm:$0xff]
      %v401 = vld [vmem:[%s196 + $0x1f0] sm:$0xff]
      %v402 = vld [vmem:[%s196 + $0x1f8] sm:$0xff]
      %403 = vst.msk [vmem:[%s208] sm:$0xff] %vm274, %v339
      %404 = vst.msk [vmem:[%s208 + $0x8] sm:$0xff] %vm274, %v340
      %405 = vst.msk [vmem:[%s208 + $0x10] sm:$0xff] %vm274, %v341
      %406 = vst.msk [vmem:[%s208 + $0x18] sm:$0xff] %vm274, %v342
      %407 = vst.msk [vmem:[%s208 + $0x20] sm:$0xff] %vm274, %v343
      %408 = vst.msk [vmem:[%s208 + $0x28] sm:$0xff] %vm274, %v344
      %409 = vst.msk [vmem:[%s208 + $0x30] sm:$0xff] %vm274, %v345
      %410 = vst.msk [vmem:[%s208 + $0x38] sm:$0xff] %vm274, %v346
      %411 = vst.msk [vmem:[%s208 + $0x40] sm:$0xff] %vm274, %v347
      %412 = vst.msk [vmem:[%s208 + $0x48] sm:$0xff] %vm274, %v348
      %413 = vst.msk [vmem:[%s208 + $0x50] sm:$0xff] %vm274, %v349
      %414 = vst.msk [vmem:[%s208 + $0x58] sm:$0xff] %vm274, %v350
      %415 = vst.msk [vmem:[%s208 + $0x60] sm:$0xff] %vm274, %v351
      %416 = vst.msk [vmem:[%s208 + $0x68] sm:$0xff] %vm274, %v352
      %417 = vst.msk [vmem:[%s208 + $0x70] sm:$0xff] %vm274, %v353
      %418 = vst.msk [vmem:[%s208 + $0x78] sm:$0xff] %vm274, %v354
      %419 = vst.msk [vmem:[%s208 + $0x80] sm:$0xff] %vm274, %v355
      %420 = vst.msk [vmem:[%s208 + $0x88] sm:$0xff] %vm274, %v356
      %421 = vst.msk [vmem:[%s208 + $0x90] sm:$0xff] %vm274, %v357
      %422 = vst.msk [vmem:[%s208 + $0x98] sm:$0xff] %vm274, %v358
      %423 = vst.msk [vmem:[%s208 + $0xa0] sm:$0xff] %vm274, %v359
      %424 = vst.msk [vmem:[%s208 + $0xa8] sm:$0xff] %vm274, %v360
      %425 = vst.msk [vmem:[%s208 + $0xb0] sm:$0xff] %vm274, %v361
      %426 = vst.msk [vmem:[%s208 + $0xb8] sm:$0xff] %vm274, %v362
      %427 = vst.msk [vmem:[%s208 + $0xc0] sm:$0xff] %vm274, %v363
      %428 = vst.msk [vmem:[%s208 + $0xc8] sm:$0xff] %vm274, %v364
      %429 = vst.msk [vmem:[%s208 + $0xd0] sm:$0xff] %vm274, %v365
      %430 = vst.msk [vmem:[%s208 + $0xd8] sm:$0xff] %vm274, %v366
      %431 = vst.msk [vmem:[%s208 + $0xe0] sm:$0xff] %vm274, %v367
      %432 = vst.msk [vmem:[%s208 + $0xe8] sm:$0xff] %vm274, %v368
      %433 = vst.msk [vmem:[%s208 + $0xf0] sm:$0xff] %vm274, %v369
      %434 = vst.msk [vmem:[%s208 + $0xf8] sm:$0xff] %vm274, %v370
      %435 = vst.msk [vmem:[%s208 + $0x100] sm:$0xff] %vm274, %v371
      %436 = vst.msk [vmem:[%s208 + $0x108] sm:$0xff] %vm274, %v372
      %437 = vst.msk [vmem:[%s208 + $0x110] sm:$0xff] %vm274, %v373
      %438 = vst.msk [vmem:[%s208 + $0x118] sm:$0xff] %vm274, %v374
      %439 = vst.msk [vmem:[%s208 + $0x120] sm:$0xff] %vm274, %v375
      %440 = vst.msk [vmem:[%s208 + $0x128] sm:$0xff] %vm274, %v376
      %441 = vst.msk [vmem:[%s208 + $0x130] sm:$0xff] %vm274, %v377
      %442 = vst.msk [vmem:[%s208 + $0x138] sm:$0xff] %vm274, %v378
      %443 = vst.msk [vmem:[%s208 + $0x140] sm:$0xff] %vm274, %v379
      %444 = vst.msk [vmem:[%s208 + $0x148] sm:$0xff] %vm274, %v380
      %445 = vst.msk [vmem:[%s208 + $0x150] sm:$0xff] %vm274, %v381
      %446 = vst.msk [vmem:[%s208 + $0x158] sm:$0xff] %vm274, %v382
      %447 = vst.msk [vmem:[%s208 + $0x160] sm:$0xff] %vm274, %v383
      %448 = vst.msk [vmem:[%s208 + $0x168] sm:$0xff] %vm274, %v384
      %449 = vst.msk [vmem:[%s208 + $0x170] sm:$0xff] %vm274, %v385
      %450 = vst.msk [vmem:[%s208 + $0x178] sm:$0xff] %vm274, %v386
      %451 = vst.msk [vmem:[%s208 + $0x180] sm:$0xff] %vm274, %v387
      %452 = vst.msk [vmem:[%s208 + $0x188] sm:$0xff] %vm274, %v388
      %453 = vst.msk [vmem:[%s208 + $0x190] sm:$0xff] %vm274, %v389
      %454 = vst.msk [vmem:[%s208 + $0x198] sm:$0xff] %vm274, %v390
      %455 = vst.msk [vmem:[%s208 + $0x1a0] sm:$0xff] %vm274, %v391
      %456 = vst.msk [vmem:[%s208 + $0x1a8] sm:$0xff] %vm274, %v392
      %457 = vst.msk [vmem:[%s208 + $0x1b0] sm:$0xff] %vm274, %v393
      %458 = vst.msk [vmem:[%s208 + $0x1b8] sm:$0xff] %vm274, %v394
      %459 = vst.msk [vmem:[%s208 + $0x1c0] sm:$0xff] %vm274, %v395
      %460 = vst.msk [vmem:[%s208 + $0x1c8] sm:$0xff] %vm274, %v396
      %461 = vst.msk [vmem:[%s208 + $0x1d0] sm:$0xff] %vm274, %v397
      %462 = vst.msk [vmem:[%s208 + $0x1d8] sm:$0xff] %vm274, %v398
      %463 = vst.msk [vmem:[%s208 + $0x1e0] sm:$0xff] %vm274, %v399
      %464 = vst.msk [vmem:[%s208 + $0x1e8] sm:$0xff] %vm274, %v400
      %465 = vst.msk [vmem:[%s208 + $0x1f0] sm:$0xff] %vm274, %v401
      %466 = vst.msk [vmem:[%s208 + $0x1f8] sm:$0xff] %vm274, %v402
      %v467 = vld [vmem:[%s190] sm:$0xff]
      %v468 = vld [vmem:[%s190 + $0x8] sm:$0xff]
      %v469 = vld [vmem:[%s190 + $0x10] sm:$0xff]
      %v470 = vld [vmem:[%s190 + $0x18] sm:$0xff]
      %v471 = vld [vmem:[%s190 + $0x20] sm:$0xff]
      %v472 = vld [vmem:[%s190 + $0x28] sm:$0xff]
      %v473 = vld [vmem:[%s190 + $0x30] sm:$0xff]
      %v474 = vld [vmem:[%s190 + $0x38] sm:$0xff]
      %v475 = vld [vmem:[%s190 + $0x40] sm:$0xff]
      %v476 = vld [vmem:[%s190 + $0x48] sm:$0xff]
      %v477 = vld [vmem:[%s190 + $0x50] sm:$0xff]
      %v478 = vld [vmem:[%s190 + $0x58] sm:$0xff]
      %v479 = vld [vmem:[%s190 + $0x60] sm:$0xff]
      %v480 = vld [vmem:[%s190 + $0x68] sm:$0xff]
      %v481 = vld [vmem:[%s190 + $0x70] sm:$0xff]
      %v482 = vld [vmem:[%s190 + $0x78] sm:$0xff]
      %v483 = vld [vmem:[%s190 + $0x80] sm:$0xff]
      %v484 = vld [vmem:[%s190 + $0x88] sm:$0xff]
      %v485 = vld [vmem:[%s190 + $0x90] sm:$0xff]
      %v486 = vld [vmem:[%s190 + $0x98] sm:$0xff]
      %v487 = vld [vmem:[%s190 + $0xa0] sm:$0xff]
      %v488 = vld [vmem:[%s190 + $0xa8] sm:$0xff]
      %v489 = vld [vmem:[%s190 + $0xb0] sm:$0xff]
      %v490 = vld [vmem:[%s190 + $0xb8] sm:$0xff]
      %v491 = vld [vmem:[%s190 + $0xc0] sm:$0xff]
      %v492 = vld [vmem:[%s190 + $0xc8] sm:$0xff]
      %v493 = vld [vmem:[%s190 + $0xd0] sm:$0xff]
      %v494 = vld [vmem:[%s190 + $0xd8] sm:$0xff]
      %v495 = vld [vmem:[%s190 + $0xe0] sm:$0xff]
      %v496 = vld [vmem:[%s190 + $0xe8] sm:$0xff]
      %v497 = vld [vmem:[%s190 + $0xf0] sm:$0xff]
      %v498 = vld [vmem:[%s190 + $0xf8] sm:$0xff]
      %v499 = vld [vmem:[%s190 + $0x100] sm:$0xff]
      %v500 = vld [vmem:[%s190 + $0x108] sm:$0xff]
      %v501 = vld [vmem:[%s190 + $0x110] sm:$0xff]
      %v502 = vld [vmem:[%s190 + $0x118] sm:$0xff]
      %v503 = vld [vmem:[%s190 + $0x120] sm:$0xff]
      %v504 = vld [vmem:[%s190 + $0x128] sm:$0xff]
      %v505 = vld [vmem:[%s190 + $0x130] sm:$0xff]
      %v506 = vld [vmem:[%s190 + $0x138] sm:$0xff]
      %v507 = vld [vmem:[%s190 + $0x140] sm:$0xff]
      %v508 = vld [vmem:[%s190 + $0x148] sm:$0xff]
      %v509 = vld [vmem:[%s190 + $0x150] sm:$0xff]
      %v510 = vld [vmem:[%s190 + $0x158] sm:$0xff]
      %v511 = vld [vmem:[%s190 + $0x160] sm:$0xff]
      %v512 = vld [vmem:[%s190 + $0x168] sm:$0xff]
      %v513 = vld [vmem:[%s190 + $0x170] sm:$0xff]
      %v514 = vld [vmem:[%s190 + $0x178] sm:$0xff]
      %v515 = vld [vmem:[%s190 + $0x180] sm:$0xff]
      %v516 = vld [vmem:[%s190 + $0x188] sm:$0xff]
      %v517 = vld [vmem:[%s190 + $0x190] sm:$0xff]
      %v518 = vld [vmem:[%s190 + $0x198] sm:$0xff]
      %v519 = vld [vmem:[%s190 + $0x1a0] sm:$0xff]
      %v520 = vld [vmem:[%s190 + $0x1a8] sm:$0xff]
      %v521 = vld [vmem:[%s190 + $0x1b0] sm:$0xff]
      %v522 = vld [vmem:[%s190 + $0x1b8] sm:$0xff]
      %v523 = vld [vmem:[%s190 + $0x1c0] sm:$0xff]
      %v524 = vld [vmem:[%s190 + $0x1c8] sm:$0xff]
      %v525 = vld [vmem:[%s190 + $0x1d0] sm:$0xff]
      %v526 = vld [vmem:[%s190 + $0x1d8] sm:$0xff]
      %v527 = vld [vmem:[%s190 + $0x1e0] sm:$0xff]
      %v528 = vld [vmem:[%s190 + $0x1e8] sm:$0xff]
      %v529 = vld [vmem:[%s190 + $0x1f0] sm:$0xff]
      %v530 = vld [vmem:[%s190 + $0x1f8] sm:$0xff]
      %595 = vrot.lane.b32.xlu0 %v467, 8
      %v596 = vpop.permute.xlu0 %595
      %597 = vrot.lane.b32.xlu0 %v468, 8
      %v598 = vpop.permute.xlu0 %597
      %599 = vrot.lane.b32.xlu0 %v469, 8
      %v600 = vpop.permute.xlu0 %599
      %601 = vrot.lane.b32.xlu0 %v470, 8
      %v602 = vpop.permute.xlu0 %601
      %603 = vrot.lane.b32.xlu0 %v471, 8
      %v604 = vpop.permute.xlu0 %603
      %605 = vrot.lane.b32.xlu0 %v472, 8
      %v606 = vpop.permute.xlu0 %605
      %607 = vrot.lane.b32.xlu0 %v473, 8
      %v608 = vpop.permute.xlu0 %607
      %609 = vrot.lane.b32.xlu0 %v474, 8
      %v610 = vpop.permute.xlu0 %609
      %611 = vrot.lane.b32.xlu0 %v475, 8
      %v612 = vpop.permute.xlu0 %611
      %613 = vrot.lane.b32.xlu0 %v476, 8
      %v614 = vpop.permute.xlu0 %613
      %615 = vrot.lane.b32.xlu0 %v477, 8
      %v616 = vpop.permute.xlu0 %615
      %617 = vrot.lane.b32.xlu0 %v478, 8
      %v618 = vpop.permute.xlu0 %617
      %619 = vrot.lane.b32.xlu0 %v479, 8
      %v620 = vpop.permute.xlu0 %619
      %621 = vrot.lane.b32.xlu0 %v480, 8
      %v622 = vpop.permute.xlu0 %621
      %623 = vrot.lane.b32.xlu0 %v481, 8
      %v624 = vpop.permute.xlu0 %623
      %625 = vrot.lane.b32.xlu0 %v482, 8
      %v626 = vpop.permute.xlu0 %625
      %627 = vrot.lane.b32.xlu0 %v483, 8
      %v628 = vpop.permute.xlu0 %627
      %629 = vrot.lane.b32.xlu0 %v484, 8
      %v630 = vpop.permute.xlu0 %629
      %631 = vrot.lane.b32.xlu0 %v485, 8
      %v632 = vpop.permute.xlu0 %631
      %633 = vrot.lane.b32.xlu0 %v486, 8
      %v634 = vpop.permute.xlu0 %633
      %635 = vrot.lane.b32.xlu0 %v487, 8
      %v636 = vpop.permute.xlu0 %635
      %637 = vrot.lane.b32.xlu0 %v488, 8
      %v638 = vpop.permute.xlu0 %637
      %639 = vrot.lane.b32.xlu0 %v489, 8
      %v640 = vpop.permute.xlu0 %639
      %641 = vrot.lane.b32.xlu0 %v490, 8
      %v642 = vpop.permute.xlu0 %641
      %643 = vrot.lane.b32.xlu0 %v491, 8
      %v644 = vpop.permute.xlu0 %643
      %645 = vrot.lane.b32.xlu0 %v492, 8
      %v646 = vpop.permute.xlu0 %645
      %647 = vrot.lane.b32.xlu0 %v493, 8
      %v648 = vpop.permute.xlu0 %647
      %649 = vrot.lane.b32.xlu0 %v494, 8
      %v650 = vpop.permute.xlu0 %649
      %651 = vrot.lane.b32.xlu0 %v495, 8
      %v652 = vpop.permute.xlu0 %651
      %653 = vrot.lane.b32.xlu0 %v496, 8
      %v654 = vpop.permute.xlu0 %653
      %655 = vrot.lane.b32.xlu0 %v497, 8
      %v656 = vpop.permute.xlu0 %655
      %657 = vrot.lane.b32.xlu0 %v498, 8
      %v658 = vpop.permute.xlu0 %657
      %659 = vrot.lane.b32.xlu0 %v499, 8
      %v660 = vpop.permute.xlu0 %659
      %661 = vrot.lane.b32.xlu0 %v500, 8
      %v662 = vpop.permute.xlu0 %661
      %663 = vrot.lane.b32.xlu0 %v501, 8
      %v664 = vpop.permute.xlu0 %663
      %665 = vrot.lane.b32.xlu0 %v502, 8
      %v666 = vpop.permute.xlu0 %665
      %667 = vrot.lane.b32.xlu0 %v503, 8
      %v668 = vpop.permute.xlu0 %667
      %669 = vrot.lane.b32.xlu0 %v504, 8
      %v670 = vpop.permute.xlu0 %669
      %671 = vrot.lane.b32.xlu0 %v505, 8
      %v672 = vpop.permute.xlu0 %671
      %673 = vrot.lane.b32.xlu0 %v506, 8
      %v674 = vpop.permute.xlu0 %673
      %675 = vrot.lane.b32.xlu0 %v507, 8
      %v676 = vpop.permute.xlu0 %675
      %677 = vrot.lane.b32.xlu0 %v508, 8
      %v678 = vpop.permute.xlu0 %677
      %679 = vrot.lane.b32.xlu0 %v509, 8
      %v680 = vpop.permute.xlu0 %679
      %681 = vrot.lane.b32.xlu0 %v510, 8
      %v682 = vpop.permute.xlu0 %681
      %683 = vrot.lane.b32.xlu0 %v511, 8
      %v684 = vpop.permute.xlu0 %683
      %685 = vrot.lane.b32.xlu0 %v512, 8
      %v686 = vpop.permute.xlu0 %685
      %687 = vrot.lane.b32.xlu0 %v513, 8
      %v688 = vpop.permute.xlu0 %687
      %689 = vrot.lane.b32.xlu0 %v514, 8
      %v690 = vpop.permute.xlu0 %689
      %691 = vrot.lane.b32.xlu0 %v515, 8
      %v692 = vpop.permute.xlu0 %691
      %693 = vrot.lane.b32.xlu0 %v516, 8
      %v694 = vpop.permute.xlu0 %693
      %695 = vrot.lane.b32.xlu0 %v517, 8
      %v696 = vpop.permute.xlu0 %695
      %697 = vrot.lane.b32.xlu0 %v518, 8
      %v698 = vpop.permute.xlu0 %697
      %699 = vrot.lane.b32.xlu0 %v519, 8
      %v700 = vpop.permute.xlu0 %699
      %701 = vrot.lane.b32.xlu0 %v520, 8
      %v702 = vpop.permute.xlu0 %701
      %703 = vrot.lane.b32.xlu0 %v521, 8
      %v704 = vpop.permute.xlu0 %703
      %705 = vrot.lane.b32.xlu0 %v522, 8
      %v706 = vpop.permute.xlu0 %705
      %707 = vrot.lane.b32.xlu0 %v523, 8
      %v708 = vpop.permute.xlu0 %707
      %709 = vrot.lane.b32.xlu0 %v524, 8
      %v710 = vpop.permute.xlu0 %709
      %711 = vrot.lane.b32.xlu0 %v525, 8
      %v712 = vpop.permute.xlu0 %711
      %713 = vrot.lane.b32.xlu0 %v526, 8
      %v714 = vpop.permute.xlu0 %713
      %715 = vrot.lane.b32.xlu0 %v527, 8
      %v716 = vpop.permute.xlu0 %715
      %717 = vrot.lane.b32.xlu0 %v528, 8
      %v718 = vpop.permute.xlu0 %717
      %719 = vrot.lane.b32.xlu0 %v529, 8
      %v720 = vpop.permute.xlu0 %719
      %721 = vrot.lane.b32.xlu0 %v530, 8
      %v722 = vpop.permute.xlu0 %721
      %vm787 = vcmask 130112
      %788 = vst.msk [vmem:[%s202] sm:$0xff] %vm787, %v596
      %789 = vst.msk [vmem:[%s202 + $0x8] sm:$0xff] %vm787, %v598
      %790 = vst.msk [vmem:[%s202 + $0x10] sm:$0xff] %vm787, %v600
      %791 = vst.msk [vmem:[%s202 + $0x18] sm:$0xff] %vm787, %v602
      %792 = vst.msk [vmem:[%s202 + $0x20] sm:$0xff] %vm787, %v604
      %793 = vst.msk [vmem:[%s202 + $0x28] sm:$0xff] %vm787, %v606
      %794 = vst.msk [vmem:[%s202 + $0x30] sm:$0xff] %vm787, %v608
      %795 = vst.msk [vmem:[%s202 + $0x38] sm:$0xff] %vm787, %v610
      %796 = vst.msk [vmem:[%s202 + $0x40] sm:$0xff] %vm787, %v612
      %797 = vst.msk [vmem:[%s202 + $0x48] sm:$0xff] %vm787, %v614
      %798 = vst.msk [vmem:[%s202 + $0x50] sm:$0xff] %vm787, %v616
      %799 = vst.msk [vmem:[%s202 + $0x58] sm:$0xff] %vm787, %v618
      %800 = vst.msk [vmem:[%s202 + $0x60] sm:$0xff] %vm787, %v620
      %801 = vst.msk [vmem:[%s202 + $0x68] sm:$0xff] %vm787, %v622
      %802 = vst.msk [vmem:[%s202 + $0x70] sm:$0xff] %vm787, %v624
      %803 = vst.msk [vmem:[%s202 + $0x78] sm:$0xff] %vm787, %v626
      %804 = vst.msk [vmem:[%s202 + $0x80] sm:$0xff] %vm787, %v628
      %805 = vst.msk [vmem:[%s202 + $0x88] sm:$0xff] %vm787, %v630
      %806 = vst.msk [vmem:[%s202 + $0x90] sm:$0xff] %vm787, %v632
      %807 = vst.msk [vmem:[%s202 + $0x98] sm:$0xff] %vm787, %v634
      %808 = vst.msk [vmem:[%s202 + $0xa0] sm:$0xff] %vm787, %v636
      %809 = vst.msk [vmem:[%s202 + $0xa8] sm:$0xff] %vm787, %v638
      %810 = vst.msk [vmem:[%s202 + $0xb0] sm:$0xff] %vm787, %v640
      %811 = vst.msk [vmem:[%s202 + $0xb8] sm:$0xff] %vm787, %v642
      %812 = vst.msk [vmem:[%s202 + $0xc0] sm:$0xff] %vm787, %v644
      %813 = vst.msk [vmem:[%s202 + $0xc8] sm:$0xff] %vm787, %v646
      %814 = vst.msk [vmem:[%s202 + $0xd0] sm:$0xff] %vm787, %v648
      %815 = vst.msk [vmem:[%s202 + $0xd8] sm:$0xff] %vm787, %v650
      %816 = vst.msk [vmem:[%s202 + $0xe0] sm:$0xff] %vm787, %v652
      %817 = vst.msk [vmem:[%s202 + $0xe8] sm:$0xff] %vm787, %v654
      %818 = vst.msk [vmem:[%s202 + $0xf0] sm:$0xff] %vm787, %v656
      %819 = vst.msk [vmem:[%s202 + $0xf8] sm:$0xff] %vm787, %v658
      %820 = vst.msk [vmem:[%s202 + $0x100] sm:$0xff] %vm787, %v660
      %821 = vst.msk [vmem:[%s202 + $0x108] sm:$0xff] %vm787, %v662
      %822 = vst.msk [vmem:[%s202 + $0x110] sm:$0xff] %vm787, %v664
      %823 = vst.msk [vmem:[%s202 + $0x118] sm:$0xff] %vm787, %v666
      %824 = vst.msk [vmem:[%s202 + $0x120] sm:$0xff] %vm787, %v668
      %825 = vst.msk [vmem:[%s202 + $0x128] sm:$0xff] %vm787, %v670
      %826 = vst.msk [vmem:[%s202 + $0x130] sm:$0xff] %vm787, %v672
      %827 = vst.msk [vmem:[%s202 + $0x138] sm:$0xff] %vm787, %v674
      %828 = vst.msk [vmem:[%s202 + $0x140] sm:$0xff] %vm787, %v676
      %829 = vst.msk [vmem:[%s202 + $0x148] sm:$0xff] %vm787, %v678
      %830 = vst.msk [vmem:[%s202 + $0x150] sm:$0xff] %vm787, %v680
      %831 = vst.msk [vmem:[%s202 + $0x158] sm:$0xff] %vm787, %v682
      %832 = vst.msk [vmem:[%s202 + $0x160] sm:$0xff] %vm787, %v684
      %833 = vst.msk [vmem:[%s202 + $0x168] sm:$0xff] %vm787, %v686
      %834 = vst.msk [vmem:[%s202 + $0x170] sm:$0xff] %vm787, %v688
      %835 = vst.msk [vmem:[%s202 + $0x178] sm:$0xff] %vm787, %v690
      %836 = vst.msk [vmem:[%s202 + $0x180] sm:$0xff] %vm787, %v692
      %837 = vst.msk [vmem:[%s202 + $0x188] sm:$0xff] %vm787, %v694
      %838 = vst.msk [vmem:[%s202 + $0x190] sm:$0xff] %vm787, %v696
      %839 = vst.msk [vmem:[%s202 + $0x198] sm:$0xff] %vm787, %v698
      %840 = vst.msk [vmem:[%s202 + $0x1a0] sm:$0xff] %vm787, %v700
      %841 = vst.msk [vmem:[%s202 + $0x1a8] sm:$0xff] %vm787, %v702
      %842 = vst.msk [vmem:[%s202 + $0x1b0] sm:$0xff] %vm787, %v704
      %843 = vst.msk [vmem:[%s202 + $0x1b8] sm:$0xff] %vm787, %v706
      %844 = vst.msk [vmem:[%s202 + $0x1c0] sm:$0xff] %vm787, %v708
      %845 = vst.msk [vmem:[%s202 + $0x1c8] sm:$0xff] %vm787, %v710
      %846 = vst.msk [vmem:[%s202 + $0x1d0] sm:$0xff] %vm787, %v712
      %847 = vst.msk [vmem:[%s202 + $0x1d8] sm:$0xff] %vm787, %v714
      %848 = vst.msk [vmem:[%s202 + $0x1e0] sm:$0xff] %vm787, %v716
      %849 = vst.msk [vmem:[%s202 + $0x1e8] sm:$0xff] %vm787, %v718
      %850 = vst.msk [vmem:[%s202 + $0x1f0] sm:$0xff] %vm787, %v720
      %851 = vst.msk [vmem:[%s202 + $0x1f8] sm:$0xff] %vm787, %v722
      %v852 = vld [vmem:[%s196] sm:$0xff]
      %v853 = vld [vmem:[%s196 + $0x8] sm:$0xff]
      %v854 = vld [vmem:[%s196 + $0x10] sm:$0xff]
      %v855 = vld [vmem:[%s196 + $0x18] sm:$0xff]
      %v856 = vld [vmem:[%s196 + $0x20] sm:$0xff]
      %v857 = vld [vmem:[%s196 + $0x28] sm:$0xff]
      %v858 = vld [vmem:[%s196 + $0x30] sm:$0xff]
      %v859 = vld [vmem:[%s196 + $0x38] sm:$0xff]
      %v860 = vld [vmem:[%s196 + $0x40] sm:$0xff]
      %v861 = vld [vmem:[%s196 + $0x48] sm:$0xff]
      %v862 = vld [vmem:[%s196 + $0x50] sm:$0xff]
      %v863 = vld [vmem:[%s196 + $0x58] sm:$0xff]
      %v864 = vld [vmem:[%s196 + $0x60] sm:$0xff]
      %v865 = vld [vmem:[%s196 + $0x68] sm:$0xff]
      %v866 = vld [vmem:[%s196 + $0x70] sm:$0xff]
      %v867 = vld [vmem:[%s196 + $0x78] sm:$0xff]
      %v868 = vld [vmem:[%s196 + $0x80] sm:$0xff]
      %v869 = vld [vmem:[%s196 + $0x88] sm:$0xff]
      %v870 = vld [vmem:[%s196 + $0x90] sm:$0xff]
      %v871 = vld [vmem:[%s196 + $0x98] sm:$0xff]
      %v872 = vld [vmem:[%s196 + $0xa0] sm:$0xff]
      %v873 = vld [vmem:[%s196 + $0xa8] sm:$0xff]
      %v874 = vld [vmem:[%s196 + $0xb0] sm:$0xff]
      %v875 = vld [vmem:[%s196 + $0xb8] sm:$0xff]
      %v876 = vld [vmem:[%s196 + $0xc0] sm:$0xff]
      %v877 = vld [vmem:[%s196 + $0xc8] sm:$0xff]
      %v878 = vld [vmem:[%s196 + $0xd0] sm:$0xff]
      %v879 = vld [vmem:[%s196 + $0xd8] sm:$0xff]
      %v880 = vld [vmem:[%s196 + $0xe0] sm:$0xff]
      %v881 = vld [vmem:[%s196 + $0xe8] sm:$0xff]
      %v882 = vld [vmem:[%s196 + $0xf0] sm:$0xff]
      %v883 = vld [vmem:[%s196 + $0xf8] sm:$0xff]
      %v884 = vld [vmem:[%s196 + $0x100] sm:$0xff]
      %v885 = vld [vmem:[%s196 + $0x108] sm:$0xff]
      %v886 = vld [vmem:[%s196 + $0x110] sm:$0xff]
      %v887 = vld [vmem:[%s196 + $0x118] sm:$0xff]
      %v888 = vld [vmem:[%s196 + $0x120] sm:$0xff]
      %v889 = vld [vmem:[%s196 + $0x128] sm:$0xff]
      %v890 = vld [vmem:[%s196 + $0x130] sm:$0xff]
      %v891 = vld [vmem:[%s196 + $0x138] sm:$0xff]
      %v892 = vld [vmem:[%s196 + $0x140] sm:$0xff]
      %v893 = vld [vmem:[%s196 + $0x148] sm:$0xff]
      %v894 = vld [vmem:[%s196 + $0x150] sm:$0xff]
      %v895 = vld [vmem:[%s196 + $0x158] sm:$0xff]
      %v896 = vld [vmem:[%s196 + $0x160] sm:$0xff]
      %v897 = vld [vmem:[%s196 + $0x168] sm:$0xff]
      %v898 = vld [vmem:[%s196 + $0x170] sm:$0xff]
      %v899 = vld [vmem:[%s196 + $0x178] sm:$0xff]
      %v900 = vld [vmem:[%s196 + $0x180] sm:$0xff]
      %v901 = vld [vmem:[%s196 + $0x188] sm:$0xff]
      %v902 = vld [vmem:[%s196 + $0x190] sm:$0xff]
      %v903 = vld [vmem:[%s196 + $0x198] sm:$0xff]
      %v904 = vld [vmem:[%s196 + $0x1a0] sm:$0xff]
      %v905 = vld [vmem:[%s196 + $0x1a8] sm:$0xff]
      %v906 = vld [vmem:[%s196 + $0x1b0] sm:$0xff]
      %v907 = vld [vmem:[%s196 + $0x1b8] sm:$0xff]
      %v908 = vld [vmem:[%s196 + $0x1c0] sm:$0xff]
      %v909 = vld [vmem:[%s196 + $0x1c8] sm:$0xff]
      %v910 = vld [vmem:[%s196 + $0x1d0] sm:$0xff]
      %v911 = vld [vmem:[%s196 + $0x1d8] sm:$0xff]
      %v912 = vld [vmem:[%s196 + $0x1e0] sm:$0xff]
      %v913 = vld [vmem:[%s196 + $0x1e8] sm:$0xff]
      %v914 = vld [vmem:[%s196 + $0x1f0] sm:$0xff]
      %v915 = vld [vmem:[%s196 + $0x1f8] sm:$0xff]
      %980 = vrot.lane.b32.xlu0 %v852, 8
      %v981 = vpop.permute.xlu0 %980
      %982 = vrot.lane.b32.xlu0 %v853, 8
      %v983 = vpop.permute.xlu0 %982
      %984 = vrot.lane.b32.xlu0 %v854, 8
      %v985 = vpop.permute.xlu0 %984
      %986 = vrot.lane.b32.xlu0 %v855, 8
      %v987 = vpop.permute.xlu0 %986
      %988 = vrot.lane.b32.xlu0 %v856, 8
      %v989 = vpop.permute.xlu0 %988
      %990 = vrot.lane.b32.xlu0 %v857, 8
      %v991 = vpop.permute.xlu0 %990
      %992 = vrot.lane.b32.xlu0 %v858, 8
      %v993 = vpop.permute.xlu0 %992
      %994 = vrot.lane.b32.xlu0 %v859, 8
      %v995 = vpop.permute.xlu0 %994
      %996 = vrot.lane.b32.xlu0 %v860, 8
      %v997 = vpop.permute.xlu0 %996
      %998 = vrot.lane.b32.xlu0 %v861, 8
      %v999 = vpop.permute.xlu0 %998
      %1000 = vrot.lane.b32.xlu0 %v862, 8
      %v1001 = vpop.permute.xlu0 %1000
      %1002 = vrot.lane.b32.xlu0 %v863, 8
      %v1003 = vpop.permute.xlu0 %1002
      %1004 = vrot.lane.b32.xlu0 %v864, 8
      %v1005 = vpop.permute.xlu0 %1004
      %1006 = vrot.lane.b32.xlu0 %v865, 8
      %v1007 = vpop.permute.xlu0 %1006
      %1008 = vrot.lane.b32.xlu0 %v866, 8
      %v1009 = vpop.permute.xlu0 %1008
      %1010 = vrot.lane.b32.xlu0 %v867, 8
      %v1011 = vpop.permute.xlu0 %1010
      %1012 = vrot.lane.b32.xlu0 %v868, 8
      %v1013 = vpop.permute.xlu0 %1012
      %1014 = vrot.lane.b32.xlu0 %v869, 8
      %v1015 = vpop.permute.xlu0 %1014
      %1016 = vrot.lane.b32.xlu0 %v870, 8
      %v1017 = vpop.permute.xlu0 %1016
      %1018 = vrot.lane.b32.xlu0 %v871, 8
      %v1019 = vpop.permute.xlu0 %1018
      %1020 = vrot.lane.b32.xlu0 %v872, 8
      %v1021 = vpop.permute.xlu0 %1020
      %1022 = vrot.lane.b32.xlu0 %v873, 8
      %v1023 = vpop.permute.xlu0 %1022
      %1024 = vrot.lane.b32.xlu0 %v874, 8
      %v1025 = vpop.permute.xlu0 %1024
      %1026 = vrot.lane.b32.xlu0 %v875, 8
      %v1027 = vpop.permute.xlu0 %1026
      %1028 = vrot.lane.b32.xlu0 %v876, 8
      %v1029 = vpop.permute.xlu0 %1028
      %1030 = vrot.lane.b32.xlu0 %v877, 8
      %v1031 = vpop.permute.xlu0 %1030
      %1032 = vrot.lane.b32.xlu0 %v878, 8
      %v1033 = vpop.permute.xlu0 %1032
      %1034 = vrot.lane.b32.xlu0 %v879, 8
      %v1035 = vpop.permute.xlu0 %1034
      %1036 = vrot.lane.b32.xlu0 %v880, 8
      %v1037 = vpop.permute.xlu0 %1036
      %1038 = vrot.lane.b32.xlu0 %v881, 8
      %v1039 = vpop.permute.xlu0 %1038
      %1040 = vrot.lane.b32.xlu0 %v882, 8
      %v1041 = vpop.permute.xlu0 %1040
      %1042 = vrot.lane.b32.xlu0 %v883, 8
      %v1043 = vpop.permute.xlu0 %1042
      %1044 = vrot.lane.b32.xlu0 %v884, 8
      %v1045 = vpop.permute.xlu0 %1044
      %1046 = vrot.lane.b32.xlu0 %v885, 8
      %v1047 = vpop.permute.xlu0 %1046
      %1048 = vrot.lane.b32.xlu0 %v886, 8
      %v1049 = vpop.permute.xlu0 %1048
      %1050 = vrot.lane.b32.xlu0 %v887, 8
      %v1051 = vpop.permute.xlu0 %1050
      %1052 = vrot.lane.b32.xlu0 %v888, 8
      %v1053 = vpop.permute.xlu0 %1052
      %1054 = vrot.lane.b32.xlu0 %v889, 8
      %v1055 = vpop.permute.xlu0 %1054
      %1056 = vrot.lane.b32.xlu0 %v890, 8
      %v1057 = vpop.permute.xlu0 %1056
      %1058 = vrot.lane.b32.xlu0 %v891, 8
      %v1059 = vpop.permute.xlu0 %1058
      %1060 = vrot.lane.b32.xlu0 %v892, 8
      %v1061 = vpop.permute.xlu0 %1060
      %1062 = vrot.lane.b32.xlu0 %v893, 8
      %v1063 = vpop.permute.xlu0 %1062
      %1064 = vrot.lane.b32.xlu0 %v894, 8
      %v1065 = vpop.permute.xlu0 %1064
      %1066 = vrot.lane.b32.xlu0 %v895, 8
      %v1067 = vpop.permute.xlu0 %1066
      %1068 = vrot.lane.b32.xlu0 %v896, 8
      %v1069 = vpop.permute.xlu0 %1068
      %1070 = vrot.lane.b32.xlu0 %v897, 8
      %v1071 = vpop.permute.xlu0 %1070
      %1072 = vrot.lane.b32.xlu0 %v898, 8
      %v1073 = vpop.permute.xlu0 %1072
      %1074 = vrot.lane.b32.xlu0 %v899, 8
      %v1075 = vpop.permute.xlu0 %1074
      %1076 = vrot.lane.b32.xlu0 %v900, 8
      %v1077 = vpop.permute.xlu0 %1076
      %1078 = vrot.lane.b32.xlu0 %v901, 8
      %v1079 = vpop.permute.xlu0 %1078
      %1080 = vrot.lane.b32.xlu0 %v902, 8
      %v1081 = vpop.permute.xlu0 %1080
      %1082 = vrot.lane.b32.xlu0 %v903, 8
      %v1083 = vpop.permute.xlu0 %1082
      %1084 = vrot.lane.b32.xlu0 %v904, 8
      %v1085 = vpop.permute.xlu0 %1084
      %1086 = vrot.lane.b32.xlu0 %v905, 8
      %v1087 = vpop.permute.xlu0 %1086
      %1088 = vrot.lane.b32.xlu0 %v906, 8
      %v1089 = vpop.permute.xlu0 %1088
      %1090 = vrot.lane.b32.xlu0 %v907, 8
      %v1091 = vpop.permute.xlu0 %1090
      %1092 = vrot.lane.b32.xlu0 %v908, 8
      %v1093 = vpop.permute.xlu0 %1092
      %1094 = vrot.lane.b32.xlu0 %v909, 8
      %v1095 = vpop.permute.xlu0 %1094
      %1096 = vrot.lane.b32.xlu0 %v910, 8
      %v1097 = vpop.permute.xlu0 %1096
      %1098 = vrot.lane.b32.xlu0 %v911, 8
      %v1099 = vpop.permute.xlu0 %1098
      %1100 = vrot.lane.b32.xlu0 %v912, 8
      %v1101 = vpop.permute.xlu0 %1100
      %1102 = vrot.lane.b32.xlu0 %v913, 8
      %v1103 = vpop.permute.xlu0 %1102
      %1104 = vrot.lane.b32.xlu0 %v914, 8
      %v1105 = vpop.permute.xlu0 %1104
      %1106 = vrot.lane.b32.xlu0 %v915, 8
      %v1107 = vpop.permute.xlu0 %1106
      %1172 = vst.msk [vmem:[%s208] sm:$0xff] %vm787, %v981
      %1173 = vst.msk [vmem:[%s208 + $0x8] sm:$0xff] %vm787, %v983
      %1174 = vst.msk [vmem:[%s208 + $0x10] sm:$0xff] %vm787, %v985
      %1175 = vst.msk [vmem:[%s208 + $0x18] sm:$0xff] %vm787, %v987
      %1176 = vst.msk [vmem:[%s208 + $0x20] sm:$0xff] %vm787, %v989
      %1177 = vst.msk [vmem:[%s208 + $0x28] sm:$0xff] %vm787, %v991
      %1178 = vst.msk [vmem:[%s208 + $0x30] sm:$0xff] %vm787, %v993
      %1179 = vst.msk [vmem:[%s208 + $0x38] sm:$0xff] %vm787, %v995
      %1180 = vst.msk [vmem:[%s208 + $0x40] sm:$0xff] %vm787, %v997
      %1181 = vst.msk [vmem:[%s208 + $0x48] sm:$0xff] %vm787, %v999
      %1182 = vst.msk [vmem:[%s208 + $0x50] sm:$0xff] %vm787, %v1001
      %1183 = vst.msk [vmem:[%s208 + $0x58] sm:$0xff] %vm787, %v1003
      %1184 = vst.msk [vmem:[%s208 + $0x60] sm:$0xff] %vm787, %v1005
      %1185 = vst.msk [vmem:[%s208 + $0x68] sm:$0xff] %vm787, %v1007
      %1186 = vst.msk [vmem:[%s208 + $0x70] sm:$0xff] %vm787, %v1009
      %1187 = vst.msk [vmem:[%s208 + $0x78] sm:$0xff] %vm787, %v1011
      %1188 = vst.msk [vmem:[%s208 + $0x80] sm:$0xff] %vm787, %v1013
      %1189 = vst.msk [vmem:[%s208 + $0x88] sm:$0xff] %vm787, %v1015
      %1190 = vst.msk [vmem:[%s208 + $0x90] sm:$0xff] %vm787, %v1017
      %1191 = vst.msk [vmem:[%s208 + $0x98] sm:$0xff] %vm787, %v1019
      %1192 = vst.msk [vmem:[%s208 + $0xa0] sm:$0xff] %vm787, %v1021
      %1193 = vst.msk [vmem:[%s208 + $0xa8] sm:$0xff] %vm787, %v1023
      %1194 = vst.msk [vmem:[%s208 + $0xb0] sm:$0xff] %vm787, %v1025
      %1195 = vst.msk [vmem:[%s208 + $0xb8] sm:$0xff] %vm787, %v1027
      %1196 = vst.msk [vmem:[%s208 + $0xc0] sm:$0xff] %vm787, %v1029
      %1197 = vst.msk [vmem:[%s208 + $0xc8] sm:$0xff] %vm787, %v1031
      %1198 = vst.msk [vmem:[%s208 + $0xd0] sm:$0xff] %vm787, %v1033
      %1199 = vst.msk [vmem:[%s208 + $0xd8] sm:$0xff] %vm787, %v1035
      %1200 = vst.msk [vmem:[%s208 + $0xe0] sm:$0xff] %vm787, %v1037
      %1201 = vst.msk [vmem:[%s208 + $0xe8] sm:$0xff] %vm787, %v1039
      %1202 = vst.msk [vmem:[%s208 + $0xf0] sm:$0xff] %vm787, %v1041
      %1203 = vst.msk [vmem:[%s208 + $0xf8] sm:$0xff] %vm787, %v1043
      %1204 = vst.msk [vmem:[%s208 + $0x100] sm:$0xff] %vm787, %v1045
      %1205 = vst.msk [vmem:[%s208 + $0x108] sm:$0xff] %vm787, %v1047
      %1206 = vst.msk [vmem:[%s208 + $0x110] sm:$0xff] %vm787, %v1049
      %1207 = vst.msk [vmem:[%s208 + $0x118] sm:$0xff] %vm787, %v1051
      %1208 = vst.msk [vmem:[%s208 + $0x120] sm:$0xff] %vm787, %v1053
      %1209 = vst.msk [vmem:[%s208 + $0x128] sm:$0xff] %vm787, %v1055
      %1210 = vst.msk [vmem:[%s208 + $0x130] sm:$0xff] %vm787, %v1057
      %1211 = vst.msk [vmem:[%s208 + $0x138] sm:$0xff] %vm787, %v1059
      %1212 = vst.msk [vmem:[%s208 + $0x140] sm:$0xff] %vm787, %v1061
      %1213 = vst.msk [vmem:[%s208 + $0x148] sm:$0xff] %vm787, %v1063
      %1214 = vst.msk [vmem:[%s208 + $0x150] sm:$0xff] %vm787, %v1065
      %1215 = vst.msk [vmem:[%s208 + $0x158] sm:$0xff] %vm787, %v1067
      %1216 = vst.msk [vmem:[%s208 + $0x160] sm:$0xff] %vm787, %v1069
      %1217 = vst.msk [vmem:[%s208 + $0x168] sm:$0xff] %vm787, %v1071
      %1218 = vst.msk [vmem:[%s208 + $0x170] sm:$0xff] %vm787, %v1073
      %1219 = vst.msk [vmem:[%s208 + $0x178] sm:$0xff] %vm787, %v1075
      %1220 = vst.msk [vmem:[%s208 + $0x180] sm:$0xff] %vm787, %v1077
      %1221 = vst.msk [vmem:[%s208 + $0x188] sm:$0xff] %vm787, %v1079
      %1222 = vst.msk [vmem:[%s208 + $0x190] sm:$0xff] %vm787, %v1081
      %1223 = vst.msk [vmem:[%s208 + $0x198] sm:$0xff] %vm787, %v1083
      %1224 = vst.msk [vmem:[%s208 + $0x1a0] sm:$0xff] %vm787, %v1085
      %1225 = vst.msk [vmem:[%s208 + $0x1a8] sm:$0xff] %vm787, %v1087
      %1226 = vst.msk [vmem:[%s208 + $0x1b0] sm:$0xff] %vm787, %v1089
      %1227 = vst.msk [vmem:[%s208 + $0x1b8] sm:$0xff] %vm787, %v1091
      %1228 = vst.msk [vmem:[%s208 + $0x1c0] sm:$0xff] %vm787, %v1093
      %1229 = vst.msk [vmem:[%s208 + $0x1c8] sm:$0xff] %vm787, %v1095
      %1230 = vst.msk [vmem:[%s208 + $0x1d0] sm:$0xff] %vm787, %v1097
      %1231 = vst.msk [vmem:[%s208 + $0x1d8] sm:$0xff] %vm787, %v1099
      %1232 = vst.msk [vmem:[%s208 + $0x1e0] sm:$0xff] %vm787, %v1101
      %1233 = vst.msk [vmem:[%s208 + $0x1e8] sm:$0xff] %vm787, %v1103
      %1234 = vst.msk [vmem:[%s208 + $0x1f0] sm:$0xff] %vm787, %v1105
      %1235 = vst.msk [vmem:[%s208 + $0x1f8] sm:$0xff] %vm787, %v1107
      %s1236 = smul.u32 64, %s15
      %p1237 = scmp.lt.s32.totalorder %s1236, 191
      %s1238 = scalar_select %p1237, %s1236, 191
      %s1239 = smul.addr %s1238, 8
      %s1240 = scalar_lea.vmem %s2, %s1239
      %s1241 = smul.u32 64, %s15
      %p1242 = scmp.lt.s32.totalorder %s1241, 191
      %s1243 = scalar_select %p1242, %s1241, 191
      %s1244 = smul.addr %s1243, 8
      %s1245 = scalar_lea.vmem %s3, %s1244
      // Predicated region
      $region29: #{tpu_custom_call.1} parent=27 // pred_check
        %p1246 = pneg %p85
      $region30: #{tpu_custom_call.1} parent=27 // pred_check_branch
        %1248 = sbr.rel (%p1246) target = $region32
      $region31: #{tpu_custom_call.1} parent=27 // pred_region
        %s1249 = smul.u32 64, %s15
      $region32: #{tpu_custom_call.1} parent=27 // pred_fallthru
        _
      // Predicated region
      $region33: #{tpu_custom_call.1} parent=27 // pred_check
        %p1250 = pneg %p111
      $region34: #{tpu_custom_call.1} parent=27 // pred_check_branch
        %1252 = sbr.rel (%p1250) target = $region36
      $region35: #{tpu_custom_call.1} parent=27 // pred_region
        %s1253 = smul.u32 64, %s15
      $region36: #{tpu_custom_call.1} parent=27 // pred_fallthru
        _
    $region28: #{tpu_custom_call.1} parent=5 // pred_fallthru
      _
    %p1254 = scmp.le.s32.totalorder 2, %s10
    // Predicated region
    $region37: #{tpu_custom_call.1} parent=5 // pred_check
      %p1255 = pneg %p1254
    $region38: #{tpu_custom_call.1} parent=5 // pred_check_branch
      %1257 = sbr.rel (%p1255) target = $region40
    $region39: #{tpu_custom_call.1} parent=5 // pred_region
      %s1258 = ssub.s32 %s10, 2
      // Predicated region
      $region41: #{tpu_custom_call.1} parent=39 // pred_check
        %p1259 = pneg %p91
      $region42: #{tpu_custom_call.1} parent=39 // pred_check_branch
        %1261 = sbr.rel (%p1259) target = $region44
      $region43: #{tpu_custom_call.1} parent=39 // pred_region
        %s1262 = smul.u32 64, %s16
        %p1263 = scmp.lt.s32.totalorder %s1262, 191
        %s1264 = scalar_select %p1263, %s1262, 191
        %s1265 = smul.addr %s1264, 8
        %s1266 = scalar_lea.vmem %s2, %s1265
      $region44: #{tpu_custom_call.1} parent=39 // pred_fallthru
        _
      // Predicated region
      $region45: #{tpu_custom_call.1} parent=39 // pred_check
        %p1267 = pneg %p117
      $region46: #{tpu_custom_call.1} parent=39 // pred_check_branch
        %1269 = sbr.rel (%p1267) target = $region48
      $region47: #{tpu_custom_call.1} parent=39 // pred_region
        %s1270 = smul.u32 64, %s16
        %p1271 = scmp.lt.s32.totalorder %s1270, 191
        %s1272 = scalar_select %p1271, %s1270, 191
        %s1273 = smul.addr %s1272, 8
        %s1274 = scalar_lea.vmem %s3, %s1273
      $region48: #{tpu_custom_call.1} parent=39 // pred_fallthru
        _
    $region40: #{tpu_custom_call.1} parent=5 // pred_fallthru
      _
  $region6: #{tpu_custom_call.1} parent=0 // loop_footer
    %s14 = sadd.s32 1, %s10
  $region7: #{tpu_custom_call.1} parent=0 // loop_footer_branch
    %9 = sbr.rel target = $region3
  $region8: #{tpu_custom_call.1} parent=0 // loop_exit
    _

</llo_original>
